<compile_context>
chip_gen: v7x
topology: tpu7x:2x2x1
jax: 0.10.0
libtpu: 0.0.40
codegen_flags: <defaults>
</compile_context>

<pallas_src>
import functools

import jax
import jax.numpy as jnp
from jax.experimental import pallas as pl
from jax.experimental.pallas import tpu as pltpu


def _stack_kernel(z_ref, w_ref, b_ref, u_ref, v_ref, o_ref, *, flat_out):
    f32 = jnp.float32
    # fc_in over the whole batch tile on the MXU, f32 accumulation, HIGHEST
    # precision for parity with the torch float32 reference.
    h0 = (jnp.dot(z_ref[...], w_ref[...],
                  precision=jax.lax.Precision.HIGHEST,
                  preferred_element_type=f32)
          + b_ref[...].astype(f32))                            # (TB, H)

    out_dt = o_ref.dtype
    # bf16 output -> do the (store-bound) outer product in bf16 as well:
    # halves HBM write traffic and, on v6e/v7x, VPU op count. f32 otherwise.
    cdt = out_dt if out_dt == jnp.bfloat16 else f32

    rp = jnp.maximum(h0, 0.0).astype(cdt)                      # relu( h0)  (TB, H)
    rn = jnp.maximum(-h0, 0.0).astype(cdt)                     # relu(-h0)  (TB, H)
    u = u_ref[...].astype(cdt)[None]                           # (1, N, 1)
    v = v_ref[...].astype(cdt)[None]                           # (1, N, 1)

    # out[b, i, :] = u[i] * relu(h0)[b, :] + v[i] * relu(-h0)[b, :]
    # Single expression feeding the store -- no named VMEM temporary.
    prod = u * rp[:, None, :] + v * rn[:, None, :]             # (TB, N, H)
    if flat_out:
        prod = prod.reshape(o_ref.shape)                       # lane-dense (TB, N*H)
    o_ref[...] = prod.astype(out_dt)


def _pick_batch_tile(b_pad, n, h, d_in, target, budget_bytes, out_elem_bytes):
    """Largest multiple-of-8 divisor of b_pad that (a) keeps the double-buffered
    z + out blocks under the VMEM budget, (b) is <= target, and (c) when the
    batch allows, leaves >= 4 grid steps (v7x megacore sharding + writeback
    pipelining)."""
    z_elem = 4
    per_row = 2 * (n * h * out_elem_bytes + d_in * z_elem)     # double-buffered
    cap = max(8, (budget_bytes // per_row) // 8 * 8)
    tb = min(b_pad, target, cap)
    if b_pad // max(tb, 1) < 4:                                # prefer >= 4 steps
        tb = min(tb, max(8, (b_pad // 4) // 8 * 8))
    tb = max(8, tb - (tb % 8))
    while b_pad % tb:                                          # terminates at 8
        tb -= 8
    return tb


def masked_graph_conv_stack(z, A, W, b, *, batch_tile=256):
    """z: (B, d_in), A: (N, N), W: (d_in, H) [fc_in weight^T], b: (1, H) -> (B, N, H)."""
    B, d_in = z.shape
    N = A.shape[0]
    H = W.shape[1]
    out_dtype = z.dtype

    # ---- node-coefficient pipeline, hoisted out of the kernel (tiny O(N^2)
    # work done exactly once; removes the resident (N,N) VMEM block).
    hp = jax.lax.Precision.HIGHEST
    Af = A.astype(jnp.float32)
    d = jnp.sum(Af, axis=1, keepdims=True)                     # (N, 1) row sums
    c = 1.0 + d / N
    p = jnp.maximum(c, 0.0)
    q = jnp.maximum(-c, 0.0)
    u = jnp.maximum(p + jnp.dot(Af, p, precision=hp) / N, 0.0)  # (N, 1)
    v = jnp.maximum(q + jnp.dot(Af, q, precision=hp) / N, 0.0)  # (N, 1)

    # ---- sublane-align the batch: pad to a multiple of 8, slice afterwards.
    B_pad = -(-B // 8) * 8
    if B_pad != B:
        z = jnp.pad(z, ((0, B_pad - B), (0, 0)))

    # ---- generation-aware VMEM budget (v7x 64 MiB / v5e-v6e 128 MiB).
    try:
        vmem_cap = pltpu.get_tpu_info().vmem_capacity_bytes
    except Exception:
        vmem_cap = 64 << 20                      # assume v7x (most constrained)
    budget = min(vmem_cap // 4, 32 << 20)        # tile-sizing budget
    vmem_limit = min(vmem_cap // 2, 64 << 20)    # explicit scoped-VMEM limit

    # ---- lane-dense output layout guard (module default H=128 is already dense).
    flat_out = (H % 128 != 0) and ((N * H) % 128 == 0)
    out_elem = jnp.dtype(out_dtype).itemsize
    tb = _pick_batch_tile(B_pad, N, H, d_in, batch_tile, budget, out_elem)

    kernel = functools.partial(_stack_kernel, flat_out=flat_out)
    out_shape = (B_pad, N * H) if flat_out else (B_pad, N, H)
    out_block = (tb, N * H) if flat_out else (tb, N, H)
    out_map = (lambda i: (i, 0)) if flat_out else (lambda i: (i, 0, 0))

    out = pl.pallas_call(
        kernel,
        out_shape=jax.ShapeDtypeStruct(out_shape, out_dtype),
        grid_spec=pl.GridSpec(
            grid=(B_pad // tb,),
            in_specs=[
                pl.BlockSpec((tb, d_in), lambda i: (i, 0)),    # z batch tile
                pl.BlockSpec((d_in, H), lambda i: (0, 0)),     # fc_in weight^T (resident)
                pl.BlockSpec((1, H), lambda i: (0, 0)),        # fc_in bias (resident)
                pl.BlockSpec((N, 1), lambda i: (0, 0)),        # u (resident)
                pl.BlockSpec((N, 1), lambda i: (0, 0)),        # v (resident)
            ],
            out_specs=pl.BlockSpec(out_block, out_map),
        ),
        compiler_params=pltpu.CompilerParams(
            dimension_semantics=("parallel",),
            vmem_limit_bytes=vmem_limit),
    )(z, W, b, u, v)

    if flat_out:
        out = out.reshape(B_pad, N, H)
    if B_pad != B:
        out = out[:B]
    return out


def _reference(z, A, W, b):
    """Direct transcription of the torch forward (f32-accurate matmuls)."""
    N = A.shape[0]
    hp = jax.lax.Precision.HIGHEST
    h = jnp.dot(z, W, precision=hp) + b                        # fc_in
    h = jnp.broadcast_to(h[:, None, :], (z.shape[0], N, W.shape[1]))
    msg = jnp.einsum("ij,bjd->bid", A, h, precision=hp)        # conv1
    h = jax.nn.relu(h + msg / N)
    msg = jnp.einsum("ij,bjd->bid", A, h, precision=hp)        # conv2
    h = jax.nn.relu(h + msg / N)
    return h


if __name__ == "__main__":
    # Small shapes consistent with the module (hidden=128 is the module default,
    # giving a lane-dense output block). B=10 exercises the pad-to-8 path and a
    # 2-step batch grid.
    B, d_in, hidden, d_nodes = 10, 16, 128, 8

    key = jax.random.PRNGKey(0)
    kz, ka, kw, kb = jax.random.split(key, 4)

    z = jax.random.normal(kz, (B, d_in), dtype=jnp.float32)
    A = (jax.random.uniform(ka, (d_nodes, d_nodes), dtype=jnp.float32) > 0.5
         ).astype(jnp.float32)

    # Deterministic nn.Linear(d_in, hidden)-shaped params (weight stored transposed).
    bound = 1.0 / (d_in ** 0.5)
    W = jax.random.uniform(kw, (d_in, hidden), dtype=jnp.float32,
                           minval=-bound, maxval=bound)
    bias = jax.random.uniform(kb, (1, hidden), dtype=jnp.float32,
                              minval=-bound, maxval=bound)

    out = masked_graph_conv_stack(z, A, W, bias)
    out = jax.block_until_ready(out)

    ref = _reference(z, A, W, bias)
    assert out.shape == (B, d_nodes, hidden)
    assert jnp.allclose(out, ref, atol=1e-4, rtol=1e-4), float(
        jnp.max(jnp.abs(out - ref)))

    print("KERNEL_OK")
</pallas_src>

<mosaic_0001>
module attributes {stable_mosaic.version = 11 : i64} {
  func.func @_stack_kernel(%arg0: i32, %arg1: memref<8x16xf32, #tpu.memory_space<vmem>>, %arg2: memref<16x128xf32, #tpu.memory_space<vmem>>, %arg3: memref<1x128xf32, #tpu.memory_space<vmem>>, %arg4: memref<8x1xf32, #tpu.memory_space<vmem>>, %arg5: memref<8x1xf32, #tpu.memory_space<vmem>>, %arg6: memref<8x8x128xf32, #tpu.memory_space<vmem>>) attributes {dimension_semantics = [#tpu.dimension_semantics<parallel>], iteration_bounds = array<i64: 2>, scalar_prefetch = 0 : i64, scratch_operands = 0 : i64, tpu.core_type = #tpu.core_type<tc>, window_params = [{transform_indices = @transform_0, window_bounds = array<i64: 8, 16>}, {pipeline_mode = #tpu.pipeline_mode<synchronous>, transform_indices = @transform_1, window_bounds = array<i64: 16, 128>}, {pipeline_mode = #tpu.pipeline_mode<synchronous>, transform_indices = @transform_2, window_bounds = array<i64: 1, 128>}, {pipeline_mode = #tpu.pipeline_mode<synchronous>, transform_indices = @transform_3, window_bounds = array<i64: 8, 1>}, {pipeline_mode = #tpu.pipeline_mode<synchronous>, transform_indices = @transform_4, window_bounds = array<i64: 8, 1>}, {transform_indices = @transform_5, window_bounds = array<i64: 8, 8, 128>}]} {
    %c0 = arith.constant 0 : index
    %c0_0 = arith.constant 0 : index
    %0 = vector.load %arg1[%c0, %c0_0] : memref<8x16xf32, #tpu.memory_space<vmem>>, vector<8x16xf32>
    %c0_1 = arith.constant 0 : index
    %c0_2 = arith.constant 0 : index
    %1 = vector.load %arg2[%c0_1, %c0_2] : memref<16x128xf32, #tpu.memory_space<vmem>>, vector<16x128xf32>
    %cst = arith.constant dense<0.000000e+00> : vector<8x128xf32>
    %2 = tpu.matmul %0, %1, %cst {dimension_numbers = #tpu.dot_dimension_numbers<[1], [0], [0], [1], [0, 0, 1, 1], [], []>, precision = #tpu.contract_precision<fp32>} : vector<8x16xf32>, vector<16x128xf32>, vector<8x128xf32> -> vector<8x128xf32>
    %c0_3 = arith.constant 0 : index
    %c0_4 = arith.constant 0 : index
    %3 = vector.load %arg3[%c0_3, %c0_4] : memref<1x128xf32, #tpu.memory_space<vmem>>, vector<1x128xf32>
    %4 = vector.broadcast %3 : vector<1x128xf32> to vector<8x128xf32>
    %5 = arith.addf %2, %4 : vector<8x128xf32>
    %cst_5 = arith.constant 0.000000e+00 : f32
    %6 = vector.broadcast %cst_5 : f32 to vector<8x128xf32>
    %7 = arith.maximumf %5, %6 : vector<8x128xf32>
    %cst_6 = arith.constant 0.000000e+00 : f32
    %8 = vector.broadcast %cst_6 : f32 to vector<8x128xf32>
    %9 = arith.subf %8, %5 : vector<8x128xf32>
    %cst_7 = arith.constant 0.000000e+00 : f32
    %10 = vector.broadcast %cst_7 : f32 to vector<8x128xf32>
    %11 = arith.maximumf %9, %10 : vector<8x128xf32>
    %c0_8 = arith.constant 0 : index
    %c0_9 = arith.constant 0 : index
    %12 = vector.load %arg4[%c0_8, %c0_9] : memref<8x1xf32, #tpu.memory_space<vmem>>, vector<8x1xf32>
    %13 = vector.shape_cast %12 : vector<8x1xf32> to vector<1x8x1xf32>
    %c0_10 = arith.constant 0 : index
    %c0_11 = arith.constant 0 : index
    %14 = vector.load %arg5[%c0_10, %c0_11] : memref<8x1xf32, #tpu.memory_space<vmem>>, vector<8x1xf32>
    %15 = vector.shape_cast %14 : vector<8x1xf32> to vector<1x8x1xf32>
    %16 = vector.shape_cast %7 : vector<8x128xf32> to vector<8x1x128xf32>
    %17 = vector.broadcast %13 : vector<1x8x1xf32> to vector<8x8x128xf32>
    %18 = vector.broadcast %16 : vector<8x1x128xf32> to vector<8x8x128xf32>
    %19 = arith.mulf %17, %18 : vector<8x8x128xf32>
    %20 = vector.shape_cast %11 : vector<8x128xf32> to vector<8x1x128xf32>
    %21 = vector.broadcast %15 : vector<1x8x1xf32> to vector<8x8x128xf32>
    %22 = vector.broadcast %20 : vector<8x1x128xf32> to vector<8x8x128xf32>
    %23 = arith.mulf %21, %22 : vector<8x8x128xf32>
    %24 = arith.addf %19, %23 : vector<8x8x128xf32>
    %c0_12 = arith.constant 0 : index
    %c0_13 = arith.constant 0 : index
    %c0_14 = arith.constant 0 : index
    %25 = vector.load %arg6[%c0_12, %c0_13, %c0_14] : memref<8x8x128xf32, #tpu.memory_space<vmem>>, vector<8x8x128xf32>
    tpu.vector_store %arg6[%c0_12, %c0_13, %c0_14], %24 {strides = array<i32>} : memref<8x8x128xf32, #tpu.memory_space<vmem>>, vector<8x8x128xf32>,
    return
  }
  func.func @transform_0(%arg0: i32) -> (i32, i32) {
    %c0_i32 = arith.constant 0 : i32
    %c0_i32_0 = arith.constant 0 : i32
    return %arg0, %c0_i32 : i32, i32
  }
  func.func @transform_1(%arg0: i32) -> (i32, i32) {
    %c0_i32 = arith.constant 0 : i32
    %c0_i32_0 = arith.constant 0 : i32
    %c0_i32_1 = arith.constant 0 : i32
    return %c0_i32, %c0_i32_0 : i32, i32
  }
  func.func @transform_2(%arg0: i32) -> (i32, i32) {
    %c0_i32 = arith.constant 0 : i32
    %c0_i32_0 = arith.constant 0 : i32
    %c0_i32_1 = arith.constant 0 : i32
    return %c0_i32, %c0_i32_0 : i32, i32
  }
  func.func @transform_3(%arg0: i32) -> (i32, i32) {
    %c0_i32 = arith.constant 0 : i32
    %c0_i32_0 = arith.constant 0 : i32
    %c0_i32_1 = arith.constant 0 : i32
    return %c0_i32, %c0_i32_0 : i32, i32
  }
  func.func @transform_4(%arg0: i32) -> (i32, i32) {
    %c0_i32 = arith.constant 0 : i32
    %c0_i32_0 = arith.constant 0 : i32
    %c0_i32_1 = arith.constant 0 : i32
    return %c0_i32, %c0_i32_0 : i32, i32
  }
  func.func @transform_5(%arg0: i32) -> (i32, i32, i32) {
    %c0_i32 = arith.constant 0 : i32
    %c0_i32_0 = arith.constant 0 : i32
    %c0_i32_1 = arith.constant 0 : i32
    return %arg0, %c0_i32, %c0_i32_0 : i32, i32, i32
  }
}

</mosaic_0001>

<llo_original>
// kernel: tpu_custom_call.1
$region0: #{tpu_custom_call.1}
  #allocation0 [shape = 'u32[]', space=smem, size = 0x4, offset = 0x4, fixed_abs, tag = 'smem constant byte address 0x4 - core index']
  #allocation1 [shape = 'u32[144,128]{1,0:T(1,128)}', space=vmem, size = 0x12000, scoped, tag = 'internal scratch']
  %s0 = inlined_call_operand.vmem [shape: f32[16,16], index: 0, kind: input, shape index: {}]
  %s1 = inlined_call_operand.hbm [shape: f32[16,128], index: 1, kind: input, shape index: {}]
  %s2 = inlined_call_operand.vmem [shape: f32[1,128], index: 2, kind: input, shape index: {}]
  %s3 = inlined_call_operand.vmem [shape: f32[8,1], index: 3, kind: input, shape index: {}]
  %s4 = inlined_call_operand.vmem [shape: f32[8,1], index: 4, kind: input, shape index: {}]
  %s5 = inlined_call_operand.hbm [shape: f32[16,8,128], index: 5, kind: output, shape index: {}]
  %s6 = sld [smem:[#allocation0]]
  $region57: #{tpu_custom_call.1} parent=0
    _
  %s8 = ssub.s32 1, %s6
  %s9 = scalar_select 0, %s8, %s6
  $region1: #{tpu_custom_call.1} parent=0
    #allocation2 [shape = 'u8[8192]{0}', space=vmem, size = 0x2000, scoped, tag = 'input window, operand 1, single buffered']
    #allocation3 [shape = 's32[2]{0}', space=sflag, size = 0x8, scoped, tag = 'scoped memory for tpu_custom_call.1']
    #allocation4 [shape = 's32[2]{0}', space=sflag, size = 0x8, scoped, tag = 'scoped memory for tpu_custom_call.1']
    #allocation5 [shape = 'u8[65536]{0}', space=vmem, size = 0x10000, scoped, tag = 'output window, operand 0']
    %10 = vsyncpa [#allocation3], 0
    %11 = vsyncpa [#allocation4], 0
    %s12 = scalar_lea.sflag [#allocation4], 1
    %13 = vsyncpa %s12, 0
    loop: start=0, step=1, limit=4
    $region2: #{tpu_custom_call.1} parent=1 // loop_pre_header
      _
    $region3: #{tpu_custom_call.1} parent=1 // loop_header
      %s15 = sphi 0, %s19
      %p16 = scmp.ge.s32.totalorder %s15, 4
      %s25 = sphi 0, %s27
      %s28 = sphi 0, %s25
      %s29 = sphi 0, %s28
      %s45 = sphi 0, %s29
      %s49 = sphi 0, %s49
      %s51 = sphi 0, %s49
      %s52 = sphi 0, %s51
      %s66 = sphi 0, %s52
      %s70 = sphi 0, %s70
      %s72 = sphi 0, %s70
      %s73 = sphi 0, %s72
      %s87 = sphi 0, %s73
      %s91 = sphi 0, %s91
      %s93 = sphi 0, %s91
      %s94 = sphi 0, %s93
      %s108 = sphi 0, %s94
      %s112 = sphi 0, %s112
      %s114 = sphi 0, %s112
      %s115 = sphi 0, %s114
      %s129 = sphi 0, %s115
      %s135 = sphi 0, %s137
      %s138 = sphi 0, %s135
      %s139 = sphi 0, %s138
      %s155 = sphi 0, %s139
    $region4: #{tpu_custom_call.1} parent=1 // loop_header_branch
      %18 = sbr.rel (%p16) target = $region8
    $region5: #{tpu_custom_call.1} parent=1 // loop_body
      %s20 = ssub.s32 %s15, 1
      %s21 = ssub.s32 %s15, 2
      %s22 = sadd.s32 %s15, 1
      %s23 = ssub.s32 %s15, %s22
      %p24 = scmp.eq.s32.totalorder %s23, 0
      %s26 = sadd.s32 %s25, 1
      %s27 = scalar_select %p24, %s25, %s26
      %p30 = pneg %p24
      %p31 = scmp.eq.s32.totalorder %s15, 1
      %p32 = por %p30, %p31
      %p33 = scmp.ne.s32.totalorder %s25, %s28
      %p34 = scmp.eq.s32.totalorder %s15, 0
      %p35 = por %p33, %p34
      %p36 = scmp.ne.s32.totalorder %s25, %s28
      %p37 = scmp.eq.s32.totalorder %s20, 1
      %p38 = por %p36, %p37
      %p39 = scmp.ne.s32.totalorder %s28, %s29
      %p40 = scmp.eq.s32.totalorder %s20, 0
      %p41 = por %p39, %p40
      %p42 = scmp.ne.s32.totalorder %s28, %s29
      %p43 = scmp.eq.s32.totalorder %s21, 1
      %p44 = por %p42, %p43
      %p46 = scmp.ne.s32.totalorder %s29, %s45
      %p47 = scmp.eq.s32.totalorder %s21, 0
      %p48 = por %p46, %p47
      %s50 = sadd.s32 %s49, 1
      %p53 = scmp.eq.s32.totalorder %s15, 1
      %p54 = scmp.ne.s32.totalorder %s49, %s51
      %p55 = scmp.eq.s32.totalorder %s15, 0
      %p56 = por %p54, %p55
      %p57 = scmp.ne.s32.totalorder %s49, %s51
      %p58 = scmp.eq.s32.totalorder %s20, 1
      %p59 = por %p57, %p58
      %p60 = scmp.ne.s32.totalorder %s51, %s52
      %p61 = scmp.eq.s32.totalorder %s20, 0
      %p62 = por %p60, %p61
      %p63 = scmp.ne.s32.totalorder %s51, %s52
      %p64 = scmp.eq.s32.totalorder %s21, 1
      %p65 = por %p63, %p64
      %p67 = scmp.ne.s32.totalorder %s52, %s66
      %p68 = scmp.eq.s32.totalorder %s21, 0
      %p69 = por %p67, %p68
      %s71 = sadd.s32 %s70, 1
      %p74 = scmp.eq.s32.totalorder %s15, 1
      %p75 = scmp.ne.s32.totalorder %s70, %s72
      %p76 = scmp.eq.s32.totalorder %s15, 0
      %p77 = por %p75, %p76
      %p78 = scmp.ne.s32.totalorder %s70, %s72
      %p79 = scmp.eq.s32.totalorder %s20, 1
      %p80 = por %p78, %p79
      %p81 = scmp.ne.s32.totalorder %s72, %s73
      %p82 = scmp.eq.s32.totalorder %s20, 0
      %p83 = por %p81, %p82
      %p84 = scmp.ne.s32.totalorder %s72, %s73
      %p85 = scmp.eq.s32.totalorder %s21, 1
      %p86 = por %p84, %p85
      %p88 = scmp.ne.s32.totalorder %s73, %s87
      %p89 = scmp.eq.s32.totalorder %s21, 0
      %p90 = por %p88, %p89
      %s92 = sadd.s32 %s91, 1
      %p95 = scmp.eq.s32.totalorder %s15, 1
      %p96 = scmp.ne.s32.totalorder %s91, %s93
      %p97 = scmp.eq.s32.totalorder %s15, 0
      %p98 = por %p96, %p97
      %p99 = scmp.ne.s32.totalorder %s91, %s93
      %p100 = scmp.eq.s32.totalorder %s20, 1
      %p101 = por %p99, %p100
      %p102 = scmp.ne.s32.totalorder %s93, %s94
      %p103 = scmp.eq.s32.totalorder %s20, 0
      %p104 = por %p102, %p103
      %p105 = scmp.ne.s32.totalorder %s93, %s94
      %p106 = scmp.eq.s32.totalorder %s21, 1
      %p107 = por %p105, %p106
      %p109 = scmp.ne.s32.totalorder %s94, %s108
      %p110 = scmp.eq.s32.totalorder %s21, 0
      %p111 = por %p109, %p110
      %s113 = sadd.s32 %s112, 1
      %p116 = scmp.eq.s32.totalorder %s15, 1
      %p117 = scmp.ne.s32.totalorder %s112, %s114
      %p118 = scmp.eq.s32.totalorder %s15, 0
      %p119 = por %p117, %p118
      %p120 = scmp.ne.s32.totalorder %s112, %s114
      %p121 = scmp.eq.s32.totalorder %s20, 1
      %p122 = por %p120, %p121
      %p123 = scmp.ne.s32.totalorder %s114, %s115
      %p124 = scmp.eq.s32.totalorder %s20, 0
      %p125 = por %p123, %p124
      %p126 = scmp.ne.s32.totalorder %s114, %s115
      %p127 = scmp.eq.s32.totalorder %s21, 1
      %p128 = por %p126, %p127
      %p130 = scmp.ne.s32.totalorder %s115, %s129
      %p131 = scmp.eq.s32.totalorder %s21, 0
      %p132 = por %p130, %p131
      %s133 = ssub.s32 %s15, %s22
      %p134 = scmp.eq.s32.totalorder %s133, 0
      %s136 = sadd.s32 %s135, 1
      %s137 = scalar_select %p134, %s135, %s136
      %p140 = pneg %p134
      %p141 = scmp.eq.s32.totalorder %s15, 1
      %p142 = por %p140, %p141
      %p143 = scmp.ne.s32.totalorder %s135, %s138
      %p144 = scmp.eq.s32.totalorder %s15, 0
      %p145 = por %p143, %p144
      %p146 = scmp.ne.s32.totalorder %s135, %s138
      %p147 = scmp.eq.s32.totalorder %s20, 1
      %p148 = por %p146, %p147
      %p149 = scmp.ne.s32.totalorder %s138, %s139
      %p150 = scmp.eq.s32.totalorder %s20, 0
      %p151 = por %p149, %p150
      %p152 = scmp.ne.s32.totalorder %s138, %s139
      %p153 = scmp.eq.s32.totalorder %s21, 1
      %p154 = por %p152, %p153
      %p156 = scmp.ne.s32.totalorder %s139, %s155
      %p157 = scmp.eq.s32.totalorder %s21, 0
      %p158 = por %p156, %p157
      %p159 = scmp.le.s32.totalorder 1, %s15
      %p160 = scmp.lt.s32.totalorder %s15, 3
      %p161 = pnand %p159, %p160
      %p162 = pneg %p161
      // Predicated region
      $region9: #{tpu_custom_call.1} parent=5 // pred_check
        _
      $region10: #{tpu_custom_call.1} parent=5 // pred_check_branch
        %164 = sbr.rel (%p161) target = $region12
      $region11: #{tpu_custom_call.1} parent=5 // pred_region
        %s165 = ssub.s32 %s15, 1
        // Predicated region
        $region13: #{tpu_custom_call.1} parent=11 // pred_check
          %p166 = pneg %p62
        $region14: #{tpu_custom_call.1} parent=11 // pred_check_branch
          %168 = sbr.rel (%p166) target = $region16
        $region15: #{tpu_custom_call.1} parent=11 // pred_region
          %s170 = ssub.s32 256, 256
          %171 = vsyncadd [#allocation3], %s170
          %s172 = sshll.u32 [#allocation2], 4
          %s173 = int_to_ptr.vmem [resolvable:$true] %s172
          %178 = dma.hbm_to_vmem [thread:$0]  %s1, 256, %s173, [#allocation3], 128, 128, 8
        $region16: #{tpu_custom_call.1} parent=11 // pred_fallthru
          _
        // Predicated region
        $region17: #{tpu_custom_call.1} parent=11 // pred_check
          %p179 = pneg %p83
        $region18: #{tpu_custom_call.1} parent=11 // pred_check_branch
          %181 = sbr.rel (%p179) target = $region20
        $region19: #{tpu_custom_call.1} parent=11 // pred_region
          _
        $region20: #{tpu_custom_call.1} parent=11 // pred_fallthru
          _
        // Predicated region
        $region21: #{tpu_custom_call.1} parent=11 // pred_check
          %p182 = pneg %p104
        $region22: #{tpu_custom_call.1} parent=11 // pred_check_branch
          %184 = sbr.rel (%p182) target = $region24
        $region23: #{tpu_custom_call.1} parent=11 // pred_region
          _
        $region24: #{tpu_custom_call.1} parent=11 // pred_fallthru
          _
        // Predicated region
        $region25: #{tpu_custom_call.1} parent=11 // pred_check
          %p185 = pneg %p125
        $region26: #{tpu_custom_call.1} parent=11 // pred_check_branch
          %187 = sbr.rel (%p185) target = $region28
        $region27: #{tpu_custom_call.1} parent=11 // pred_region
          _
        $region28: #{tpu_custom_call.1} parent=11 // pred_fallthru
          _
      $region12: #{tpu_custom_call.1} parent=5 // pred_fallthru
        _
      %p188 = scmp.lt.s32.totalorder %s15, 2
      // Predicated region
      $region29: #{tpu_custom_call.1} parent=5 // pred_check
        %p189 = pneg %p188
      $region30: #{tpu_custom_call.1} parent=5 // pred_check_branch
        %191 = sbr.rel (%p189) target = $region32
      $region31: #{tpu_custom_call.1} parent=5 // pred_region
        // Predicated region
        $region33: #{tpu_custom_call.1} parent=31 // pred_check
          %p192 = pneg %p35
        $region34: #{tpu_custom_call.1} parent=31 // pred_check_branch
          %194 = sbr.rel (%p192) target = $region36
        $region35: #{tpu_custom_call.1} parent=31 // pred_region
          %p195 = scmp.lt.s32.totalorder %s15, 1
          %s196 = scalar_select %p195, %s15, 1
          %s197 = smul.addr %s196, 8
          %s198 = scalar_lea.vmem %s0, %s197
        $region36: #{tpu_custom_call.1} parent=31 // pred_fallthru
          _
      $region32: #{tpu_custom_call.1} parent=5 // pred_fallthru
        _
      %p199 = scmp.le.s32.totalorder 1, %s15
      %p200 = scmp.lt.s32.totalorder %s15, 3
      %p201 = pnand %p199, %p200
      %p202 = pneg %p201
      // Predicated region
      $region37: #{tpu_custom_call.1} parent=5 // pred_check
        _
      $region38: #{tpu_custom_call.1} parent=5 // pred_check_branch
        %204 = sbr.rel (%p201) target = $region40
      $region39: #{tpu_custom_call.1} parent=5 // pred_region
        %s205 = ssub.s32 %s15, 1
        // Predicated region
        $region41: #{tpu_custom_call.1} parent=39 // pred_check
          %p206 = pneg %p62
        $region42: #{tpu_custom_call.1} parent=39 // pred_check_branch
          %208 = sbr.rel (%p206) target = $region44
        $region43: #{tpu_custom_call.1} parent=39 // pred_region
          %209 = dma.done [#allocation3], 256
        $region44: #{tpu_custom_call.1} parent=39 // pred_fallthru
          _
        %p210 = scmp.lt.s32.totalorder %s20, 1
        %s211 = scalar_select %p210, %s20, 1
        %s212 = smul.addr %s211, 8
        %s213 = scalar_lea.vmem %s0, %s212
        %p214 = pneg %p41
        %p215 = pneg %p38
        %p216 = pneg %p62
        %p217 = pneg %p59
        %p218 = pneg %p83
        %p219 = pneg %p80
        %p220 = pneg %p104
        %p221 = pneg %p101
        %p222 = pneg %p125
        %p223 = pneg %p122
        %p224 = pneg %p151
        %p225 = pneg %p148
        %s226 = sand.u32 %s138, 1
        %s227 = scalar_lea.sflag [#allocation4], %s226
        %s228 = sand.u32 %s138, 1
        %s229 = smul.addr %s228, 64
        %s230 = scalar_lea.vmem [#allocation5], %s229
        %p231 = scmp.lt.s32.totalorder %s20, 1
        %s232 = scalar_select %p231, %s20, 1
        %s233 = smul.addr %s232, 8
        %s234 = scalar_lea.vmem %s0, %s233
        %s235 = smul.u32 8, %s20
        %v236 = vld [vmem:[%s234] sm:$0xff]
        %v237 = vld [vmem:[#allocation2] sm:$0xff]
        %v238 = vld [vmem:[#allocation2 + $0x8] sm:$0xff]
        %v239 = vld [vmem:[%s2] sm:$0x1]
        %v241 = vlaneseq
        %v242 = vshrl.u32 %v241, 7
        %v243 = vsub.s32 0, %v242
        %v244 = vrot.slane %v239, %v243
        %vm246 = vcmask 130048
        %v248 = vsel %vm246, %v236, 0
        %250 = vmatprep.subr.mxu0 0.0
        %v251 = vand.u32 %v237, 4294901760
        %252 = vmatpush1.msra.mxu0 %v251
        %253 = vmatprep.subr.mxu0 0.0
        %v254 = vand.u32 %v238, 4294901760
        %255 = vmatpush1.msra.mxu0 %v254
        %256 = vmatprep.subr.mxu0 0.0
        %257 = vmatpush1.msra.mxu0 0.0
        %258 = vmatprep.subr.mxu0 0.0
        %259 = vmatpush1.msra.mxu0 0.0
        %260 = vmatprep.subr.mxu0 0.0
        %261 = vmatpush1.msra.mxu0 0.0
        %262 = vmatprep.subr.mxu0 0.0
        %263 = vmatpush1.msra.mxu0 0.0
        %264 = vmatprep.subr.mxu0 0.0
        %265 = vmatpush1.msra.mxu0 0.0
        %266 = vmatprep.subr.mxu0 0.0
        %267 = vmatpush1.msra.mxu0 0.0
        %268 = vmatprep.subr.mxu0 0.0
        %269 = vmatpush1.msra.mxu0 0.0
        %270 = vmatprep.subr.mxu0 0.0
        %271 = vmatpush1.msra.mxu0 0.0
        %272 = vmatprep.subr.mxu0 0.0
        %273 = vmatpush1.msra.mxu0 0.0
        %274 = vmatprep.subr.mxu0 0.0
        %275 = vmatpush1.msra.mxu0 0.0
        %276 = vmatprep.subr.mxu0 0.0
        %277 = vmatpush1.msra.mxu0 0.0
        %278 = vmatprep.subr.mxu0 0.0
        %279 = vmatpush1.msra.mxu0 0.0
        %280 = vmatprep.subr.mxu0 0.0
        %281 = vmatpush1.msra.mxu0 0.0
        %282 = vmatprep.subr.mxu0 0.0
        %283 = vmatpush1.msra.mxu0 0.0
        %284 = vmatprep.subr.mxu0 0.0
        %285 = vmatpush1.msra.mxu0 0.0
        %286 = vmatprep.subr.mxu0 0.0
        %287 = vmatpush1.msra.mxu0 0.0
        %288 = vmatprep.subr.mxu0 0.0
        %289 = vmatpush1.msra.mxu0 0.0
        %290 = vmatprep.subr.mxu0 0.0
        %291 = vmatpush1.msra.mxu0 0.0
        %292 = vmatprep.subr.mxu0 0.0
        %293 = vmatpush1.msra.mxu0 0.0
        %294 = vmatprep.subr.mxu0 0.0
        %295 = vmatpush1.msra.mxu0 0.0
        %296 = vmatprep.subr.mxu0 0.0
        %297 = vmatpush1.msra.mxu0 0.0
        %298 = vmatprep.subr.mxu0 0.0
        %299 = vmatpush1.msra.mxu0 0.0
        %300 = vmatprep.subr.mxu0 0.0
        %301 = vmatpush1.msra.mxu0 0.0
        %302 = vmatprep.subr.mxu0 0.0
        %303 = vmatpush1.msra.mxu0 0.0
        %304 = vmatprep.subr.mxu0 0.0
        %305 = vmatpush1.msra.mxu0 0.0
        %306 = vmatprep.subr.mxu0 0.0
        %307 = vmatpush1.msra.mxu0 0.0
        %308 = vmatprep.subr.mxu0 0.0
        %309 = vmatpush1.msra.mxu0 0.0
        %310 = vmatprep.subr.mxu0 0.0
        %311 = vmatpush1.msra.mxu0 0.0
        %312 = vmatprep.subr.mxu0 0.0
        %313 = vmatpush1.msra.mxu0 0.0
        %314 = vmatprep.subr.mxu0 0.0
        %315 = vmatpush1.msra.mxu0 0.0
        %316 = vmatprep.mubr.f32.mxu0 0.0
        %v317 = vand.u32 %v248, 4294901760
        %v318 = vsub.f32 %v248, %v317
        %v319 = vand.u32 %v318, 4294901760
        %v320 = vsub.f32 %v318, %v319
        %v321 = vand.u32 %v320, 4294901760
        %322 = vmatmul.mubr.f32.gmra.mrb[0].mxu0 %v321
        %v323 = vpop.f32.mrb[0].mxu0
        %v324 = vadd.f32 %v244, %v323
        %v325 = vpop.f32.mrb[0].mxu0
        %326 = vdwg.mxu0
        %327 = vmatprep.subr.mxu0 0.0
        %v328 = vand.u32 %v237, 4294901760
        %v329 = vsub.f32 %v237, %v328
        %v330 = vand.u32 %v329, 4294901760
        %v331 = vsub.f32 %v329, %v330
        %v332 = vand.u32 %v331, 4294901760
        %333 = vmatpush1.msra.mxu0 %v332
        %334 = vmatprep.subr.mxu0 0.0
        %v335 = vand.u32 %v238, 4294901760
        %v336 = vsub.f32 %v238, %v335
        %v337 = vand.u32 %v336, 4294901760
        %v338 = vsub.f32 %v336, %v337
        %v339 = vand.u32 %v338, 4294901760
        %340 = vmatpush1.msra.mxu0 %v339
        %341 = vmatprep.subr.mxu0 0.0
        %342 = vmatpush1.msra.mxu0 0.0
        %343 = vmatprep.subr.mxu0 0.0
        %344 = vmatpush1.msra.mxu0 0.0
        %345 = vmatprep.subr.mxu0 0.0
        %346 = vmatpush1.msra.mxu0 0.0
        %347 = vmatprep.subr.mxu0 0.0
        %348 = vmatpush1.msra.mxu0 0.0
        %349 = vmatprep.subr.mxu0 0.0
        %350 = vmatpush1.msra.mxu0 0.0
        %351 = vmatprep.subr.mxu0 0.0
        %352 = vmatpush1.msra.mxu0 0.0
        %353 = vmatprep.subr.mxu0 0.0
        %354 = vmatpush1.msra.mxu0 0.0
        %355 = vmatprep.subr.mxu0 0.0
        %356 = vmatpush1.msra.mxu0 0.0
        %357 = vmatprep.subr.mxu0 0.0
        %358 = vmatpush1.msra.mxu0 0.0
        %359 = vmatprep.subr.mxu0 0.0
        %360 = vmatpush1.msra.mxu0 0.0
        %361 = vmatprep.subr.mxu0 0.0
        %362 = vmatpush1.msra.mxu0 0.0
        %363 = vmatprep.subr.mxu0 0.0
        %364 = vmatpush1.msra.mxu0 0.0
        %365 = vmatprep.subr.mxu0 0.0
        %366 = vmatpush1.msra.mxu0 0.0
        %367 = vmatprep.subr.mxu0 0.0
        %368 = vmatpush1.msra.mxu0 0.0
        %369 = vmatprep.subr.mxu0 0.0
        %370 = vmatpush1.msra.mxu0 0.0
        %371 = vmatprep.subr.mxu0 0.0
        %372 = vmatpush1.msra.mxu0 0.0
        %373 = vmatprep.subr.mxu0 0.0
        %374 = vmatpush1.msra.mxu0 0.0
        %375 = vmatprep.subr.mxu0 0.0
        %376 = vmatpush1.msra.mxu0 0.0
        %377 = vmatprep.subr.mxu0 0.0
        %378 = vmatpush1.msra.mxu0 0.0
        %379 = vmatprep.subr.mxu0 0.0
        %380 = vmatpush1.msra.mxu0 0.0
        %381 = vmatprep.subr.mxu0 0.0
        %382 = vmatpush1.msra.mxu0 0.0
        %383 = vmatprep.subr.mxu0 0.0
        %384 = vmatpush1.msra.mxu0 0.0
        %385 = vmatprep.subr.mxu0 0.0
        %386 = vmatpush1.msra.mxu0 0.0
        %387 = vmatprep.subr.mxu0 0.0
        %388 = vmatpush1.msra.mxu0 0.0
        %389 = vmatprep.subr.mxu0 0.0
        %390 = vmatpush1.msra.mxu0 0.0
        %391 = vmatprep.subr.mxu0 0.0
        %392 = vmatpush1.msra.mxu0 0.0
        %393 = vmatprep.subr.mxu0 0.0
        %394 = vmatpush1.msra.mxu0 0.0
        %395 = vmatprep.subr.mxu0 0.0
        %396 = vmatpush1.msra.mxu0 0.0
        %397 = vmatprep.subr.mxu0 0.0
        %398 = vmatpush1.msra.mxu0 0.0
        %399 = vmatprep.subr.mxu0 0.0
        %400 = vmatpush1.msra.mxu0 0.0
        %401 = vmatprep.mubr.f32.mxu0 0.0
        %v402 = vand.u32 %v248, 4294901760
        %403 = vmatmul.mubr.f32.gmra.mrb[0].mxu0 %v402
        %v404 = vpop.f32.mrb[0].mxu0
        %v405 = vadd.f32 %v324, %v404
        %v406 = vpop.f32.mrb[0].mxu0
        %407 = vdwg.mxu0
        %408 = vmatprep.subr.mxu0 0.0
        %v409 = vand.u32 %v237, 4294901760
        %v410 = vsub.f32 %v237, %v409
        %411 = vmatpush1.msra.mxu0 %v410
        %412 = vmatprep.subr.mxu0 0.0
        %v413 = vand.u32 %v238, 4294901760
        %v414 = vsub.f32 %v238, %v413
        %415 = vmatpush1.msra.mxu0 %v414
        %416 = vmatprep.subr.mxu0 0.0
        %417 = vmatpush1.msra.mxu0 0.0
        %418 = vmatprep.subr.mxu0 0.0
        %419 = vmatpush1.msra.mxu0 0.0
        %420 = vmatprep.subr.mxu0 0.0
        %421 = vmatpush1.msra.mxu0 0.0
        %422 = vmatprep.subr.mxu0 0.0
        %423 = vmatpush1.msra.mxu0 0.0
        %424 = vmatprep.subr.mxu0 0.0
        %425 = vmatpush1.msra.mxu0 0.0
        %426 = vmatprep.subr.mxu0 0.0
        %427 = vmatpush1.msra.mxu0 0.0
        %428 = vmatprep.subr.mxu0 0.0
        %429 = vmatpush1.msra.mxu0 0.0
        %430 = vmatprep.subr.mxu0 0.0
        %431 = vmatpush1.msra.mxu0 0.0
        %432 = vmatprep.subr.mxu0 0.0
        %433 = vmatpush1.msra.mxu0 0.0
        %434 = vmatprep.subr.mxu0 0.0
        %435 = vmatpush1.msra.mxu0 0.0
        %436 = vmatprep.subr.mxu0 0.0
        %437 = vmatpush1.msra.mxu0 0.0
        %438 = vmatprep.subr.mxu0 0.0
        %439 = vmatpush1.msra.mxu0 0.0
        %440 = vmatprep.subr.mxu0 0.0
        %441 = vmatpush1.msra.mxu0 0.0
        %442 = vmatprep.subr.mxu0 0.0
        %443 = vmatpush1.msra.mxu0 0.0
        %444 = vmatprep.subr.mxu0 0.0
        %445 = vmatpush1.msra.mxu0 0.0
        %446 = vmatprep.subr.mxu0 0.0
        %447 = vmatpush1.msra.mxu0 0.0
        %448 = vmatprep.subr.mxu0 0.0
        %449 = vmatpush1.msra.mxu0 0.0
        %450 = vmatprep.subr.mxu0 0.0
        %451 = vmatpush1.msra.mxu0 0.0
        %452 = vmatprep.subr.mxu0 0.0
        %453 = vmatpush1.msra.mxu0 0.0
        %454 = vmatprep.subr.mxu0 0.0
        %455 = vmatpush1.msra.mxu0 0.0
        %456 = vmatprep.subr.mxu0 0.0
        %457 = vmatpush1.msra.mxu0 0.0
        %458 = vmatprep.subr.mxu0 0.0
        %459 = vmatpush1.msra.mxu0 0.0
        %460 = vmatprep.subr.mxu0 0.0
        %461 = vmatpush1.msra.mxu0 0.0
        %462 = vmatprep.subr.mxu0 0.0
        %463 = vmatpush1.msra.mxu0 0.0
        %464 = vmatprep.subr.mxu0 0.0
        %465 = vmatpush1.msra.mxu0 0.0
        %466 = vmatprep.subr.mxu0 0.0
        %467 = vmatpush1.msra.mxu0 0.0
        %468 = vmatprep.subr.mxu0 0.0
        %469 = vmatpush1.msra.mxu0 0.0
        %470 = vmatprep.subr.mxu0 0.0
        %471 = vmatpush1.msra.mxu0 0.0
        %472 = vmatprep.subr.mxu0 0.0
        %473 = vmatpush1.msra.mxu0 0.0
        %474 = vmatprep.subr.mxu0 0.0
        %475 = vmatpush1.msra.mxu0 0.0
        %476 = vmatprep.mubr.f32.mxu0 0.0
        %v477 = vand.u32 %v248, 4294901760
        %v478 = vsub.f32 %v248, %v477
        %479 = vmatmul.mubr.f32.gmra.mrb[0].mxu0 %v478
        %v480 = vpop.f32.mrb[0].mxu0
        %v481 = vadd.f32 %v405, %v480
        %v482 = vpop.f32.mrb[0].mxu0
        %483 = vdwg.mxu0
        %484 = vmatprep.subr.mxu0 0.0
        %v485 = vand.u32 %v237, 4294901760
        %486 = vmatpush1.msra.mxu0 %v485
        %487 = vmatprep.subr.mxu0 0.0
        %v488 = vand.u32 %v238, 4294901760
        %489 = vmatpush1.msra.mxu0 %v488
        %490 = vmatprep.subr.mxu0 0.0
        %491 = vmatpush1.msra.mxu0 0.0
        %492 = vmatprep.subr.mxu0 0.0
        %493 = vmatpush1.msra.mxu0 0.0
        %494 = vmatprep.subr.mxu0 0.0
        %495 = vmatpush1.msra.mxu0 0.0
        %496 = vmatprep.subr.mxu0 0.0
        %497 = vmatpush1.msra.mxu0 0.0
        %498 = vmatprep.subr.mxu0 0.0
        %499 = vmatpush1.msra.mxu0 0.0
        %500 = vmatprep.subr.mxu0 0.0
        %501 = vmatpush1.msra.mxu0 0.0
        %502 = vmatprep.subr.mxu0 0.0
        %503 = vmatpush1.msra.mxu0 0.0
        %504 = vmatprep.subr.mxu0 0.0
        %505 = vmatpush1.msra.mxu0 0.0
        %506 = vmatprep.subr.mxu0 0.0
        %507 = vmatpush1.msra.mxu0 0.0
        %508 = vmatprep.subr.mxu0 0.0
        %509 = vmatpush1.msra.mxu0 0.0
        %510 = vmatprep.subr.mxu0 0.0
        %511 = vmatpush1.msra.mxu0 0.0
        %512 = vmatprep.subr.mxu0 0.0
        %513 = vmatpush1.msra.mxu0 0.0
        %514 = vmatprep.subr.mxu0 0.0
        %515 = vmatpush1.msra.mxu0 0.0
        %516 = vmatprep.subr.mxu0 0.0
        %517 = vmatpush1.msra.mxu0 0.0
        %518 = vmatprep.subr.mxu0 0.0
        %519 = vmatpush1.msra.mxu0 0.0
        %520 = vmatprep.subr.mxu0 0.0
        %521 = vmatpush1.msra.mxu0 0.0
        %522 = vmatprep.subr.mxu0 0.0
        %523 = vmatpush1.msra.mxu0 0.0
        %524 = vmatprep.subr.mxu0 0.0
        %525 = vmatpush1.msra.mxu0 0.0
        %526 = vmatprep.subr.mxu0 0.0
        %527 = vmatpush1.msra.mxu0 0.0
        %528 = vmatprep.subr.mxu0 0.0
        %529 = vmatpush1.msra.mxu0 0.0
        %530 = vmatprep.subr.mxu0 0.0
        %531 = vmatpush1.msra.mxu0 0.0
        %532 = vmatprep.subr.mxu0 0.0
        %533 = vmatpush1.msra.mxu0 0.0
        %534 = vmatprep.subr.mxu0 0.0
        %535 = vmatpush1.msra.mxu0 0.0
        %536 = vmatprep.subr.mxu0 0.0
        %537 = vmatpush1.msra.mxu0 0.0
        %538 = vmatprep.subr.mxu0 0.0
        %539 = vmatpush1.msra.mxu0 0.0
        %540 = vmatprep.subr.mxu0 0.0
        %541 = vmatpush1.msra.mxu0 0.0
        %542 = vmatprep.subr.mxu0 0.0
        %543 = vmatpush1.msra.mxu0 0.0
        %544 = vmatprep.subr.mxu0 0.0
        %545 = vmatpush1.msra.mxu0 0.0
        %546 = vmatprep.subr.mxu0 0.0
        %547 = vmatpush1.msra.mxu0 0.0
        %548 = vmatprep.subr.mxu0 0.0
        %549 = vmatpush1.msra.mxu0 0.0
        %550 = vmatprep.mubr.f32.mxu0 0.0
        %v551 = vand.u32 %v248, 4294901760
        %v552 = vsub.f32 %v248, %v551
        %v553 = vand.u32 %v552, 4294901760
        %554 = vmatmul.mubr.f32.gmra.mrb[0].mxu0 %v553
        %v555 = vpop.f32.mrb[0].mxu0
        %v556 = vadd.f32 %v481, %v555
        %v557 = vpop.f32.mrb[0].mxu0
        %558 = vdwg.mxu0
        %559 = vmatprep.subr.mxu0 0.0
        %v560 = vand.u32 %v237, 4294901760
        %v561 = vsub.f32 %v237, %v560
        %v562 = vand.u32 %v561, 4294901760
        %563 = vmatpush1.msra.mxu0 %v562
        %564 = vmatprep.subr.mxu0 0.0
        %v565 = vand.u32 %v238, 4294901760
        %v566 = vsub.f32 %v238, %v565
        %v567 = vand.u32 %v566, 4294901760
        %568 = vmatpush1.msra.mxu0 %v567
        %569 = vmatprep.subr.mxu0 0.0
        %570 = vmatpush1.msra.mxu0 0.0
        %571 = vmatprep.subr.mxu0 0.0
        %572 = vmatpush1.msra.mxu0 0.0
        %573 = vmatprep.subr.mxu0 0.0
        %574 = vmatpush1.msra.mxu0 0.0
        %575 = vmatprep.subr.mxu0 0.0
        %576 = vmatpush1.msra.mxu0 0.0
        %577 = vmatprep.subr.mxu0 0.0
        %578 = vmatpush1.msra.mxu0 0.0
        %579 = vmatprep.subr.mxu0 0.0
        %580 = vmatpush1.msra.mxu0 0.0
        %581 = vmatprep.subr.mxu0 0.0
        %582 = vmatpush1.msra.mxu0 0.0
        %583 = vmatprep.subr.mxu0 0.0
        %584 = vmatpush1.msra.mxu0 0.0
        %585 = vmatprep.subr.mxu0 0.0
        %586 = vmatpush1.msra.mxu0 0.0
        %587 = vmatprep.subr.mxu0 0.0
        %588 = vmatpush1.msra.mxu0 0.0
        %589 = vmatprep.subr.mxu0 0.0
        %590 = vmatpush1.msra.mxu0 0.0
        %591 = vmatprep.subr.mxu0 0.0
        %592 = vmatpush1.msra.mxu0 0.0
        %593 = vmatprep.subr.mxu0 0.0
        %594 = vmatpush1.msra.mxu0 0.0
        %595 = vmatprep.subr.mxu0 0.0
        %596 = vmatpush1.msra.mxu0 0.0
        %597 = vmatprep.subr.mxu0 0.0
        %598 = vmatpush1.msra.mxu0 0.0
        %599 = vmatprep.subr.mxu0 0.0
        %600 = vmatpush1.msra.mxu0 0.0
        %601 = vmatprep.subr.mxu0 0.0
        %602 = vmatpush1.msra.mxu0 0.0
        %603 = vmatprep.subr.mxu0 0.0
        %604 = vmatpush1.msra.mxu0 0.0
        %605 = vmatprep.subr.mxu0 0.0
        %606 = vmatpush1.msra.mxu0 0.0
        %607 = vmatprep.subr.mxu0 0.0
        %608 = vmatpush1.msra.mxu0 0.0
        %609 = vmatprep.subr.mxu0 0.0
        %610 = vmatpush1.msra.mxu0 0.0
        %611 = vmatprep.subr.mxu0 0.0
        %612 = vmatpush1.msra.mxu0 0.0
        %613 = vmatprep.subr.mxu0 0.0
        %614 = vmatpush1.msra.mxu0 0.0
        %615 = vmatprep.subr.mxu0 0.0
        %616 = vmatpush1.msra.mxu0 0.0
        %617 = vmatprep.subr.mxu0 0.0
        %618 = vmatpush1.msra.mxu0 0.0
        %619 = vmatprep.subr.mxu0 0.0
        %620 = vmatpush1.msra.mxu0 0.0
        %621 = vmatprep.subr.mxu0 0.0
        %622 = vmatpush1.msra.mxu0 0.0
        %623 = vmatprep.subr.mxu0 0.0
        %624 = vmatpush1.msra.mxu0 0.0
        %625 = vmatprep.subr.mxu0 0.0
        %626 = vmatpush1.msra.mxu0 0.0
        %627 = vmatprep.subr.mxu0 0.0
        %628 = vmatpush1.msra.mxu0 0.0
        %629 = vmatprep.mubr.f32.mxu0 0.0
        %v630 = vand.u32 %v248, 4294901760
        %631 = vmatmul.mubr.f32.gmra.mrb[0].mxu0 %v630
        %v632 = vpop.f32.mrb[0].mxu0
        %v633 = vadd.f32 %v556, %v632
        %v634 = vpop.f32.mrb[0].mxu0
        %635 = vdwg.mxu0
        %636 = vmatprep.subr.mxu0 0.0
        %v637 = vand.u32 %v237, 4294901760
        %638 = vmatpush1.msra.mxu0 %v637
        %639 = vmatprep.subr.mxu0 0.0
        %v640 = vand.u32 %v238, 4294901760
        %641 = vmatpush1.msra.mxu0 %v640
        %642 = vmatprep.subr.mxu0 0.0
        %643 = vmatpush1.msra.mxu0 0.0
        %644 = vmatprep.subr.mxu0 0.0
        %645 = vmatpush1.msra.mxu0 0.0
        %646 = vmatprep.subr.mxu0 0.0
        %647 = vmatpush1.msra.mxu0 0.0
        %648 = vmatprep.subr.mxu0 0.0
        %649 = vmatpush1.msra.mxu0 0.0
        %650 = vmatprep.subr.mxu0 0.0
        %651 = vmatpush1.msra.mxu0 0.0
        %652 = vmatprep.subr.mxu0 0.0
        %653 = vmatpush1.msra.mxu0 0.0
        %654 = vmatprep.subr.mxu0 0.0
        %655 = vmatpush1.msra.mxu0 0.0
        %656 = vmatprep.subr.mxu0 0.0
        %657 = vmatpush1.msra.mxu0 0.0
        %658 = vmatprep.subr.mxu0 0.0
        %659 = vmatpush1.msra.mxu0 0.0
        %660 = vmatprep.subr.mxu0 0.0
        %661 = vmatpush1.msra.mxu0 0.0
        %662 = vmatprep.subr.mxu0 0.0
        %663 = vmatpush1.msra.mxu0 0.0
        %664 = vmatprep.subr.mxu0 0.0
        %665 = vmatpush1.msra.mxu0 0.0
        %666 = vmatprep.subr.mxu0 0.0
        %667 = vmatpush1.msra.mxu0 0.0
        %668 = vmatprep.subr.mxu0 0.0
        %669 = vmatpush1.msra.mxu0 0.0
        %670 = vmatprep.subr.mxu0 0.0
        %671 = vmatpush1.msra.mxu0 0.0
        %672 = vmatprep.subr.mxu0 0.0
        %673 = vmatpush1.msra.mxu0 0.0
        %674 = vmatprep.subr.mxu0 0.0
        %675 = vmatpush1.msra.mxu0 0.0
        %676 = vmatprep.subr.mxu0 0.0
        %677 = vmatpush1.msra.mxu0 0.0
        %678 = vmatprep.subr.mxu0 0.0
        %679 = vmatpush1.msra.mxu0 0.0
        %680 = vmatprep.subr.mxu0 0.0
        %681 = vmatpush1.msra.mxu0 0.0
        %682 = vmatprep.subr.mxu0 0.0
        %683 = vmatpush1.msra.mxu0 0.0
        %684 = vmatprep.subr.mxu0 0.0
        %685 = vmatpush1.msra.mxu0 0.0
        %686 = vmatprep.subr.mxu0 0.0
        %687 = vmatpush1.msra.mxu0 0.0
        %688 = vmatprep.subr.mxu0 0.0
        %689 = vmatpush1.msra.mxu0 0.0
        %690 = vmatprep.subr.mxu0 0.0
        %691 = vmatpush1.msra.mxu0 0.0
        %692 = vmatprep.subr.mxu0 0.0
        %693 = vmatpush1.msra.mxu0 0.0
        %694 = vmatprep.subr.mxu0 0.0
        %695 = vmatpush1.msra.mxu0 0.0
        %696 = vmatprep.subr.mxu0 0.0
        %697 = vmatpush1.msra.mxu0 0.0
        %698 = vmatprep.subr.mxu0 0.0
        %699 = vmatpush1.msra.mxu0 0.0
        %700 = vmatprep.subr.mxu0 0.0
        %701 = vmatpush1.msra.mxu0 0.0
        %702 = vmatprep.mubr.f32.mxu0 0.0
        %v703 = vand.u32 %v248, 4294901760
        %704 = vmatmul.mubr.f32.gmra.mrb[0].mxu0 %v703
        %v705 = vpop.f32.mrb[0].mxu0
        %v706 = vadd.f32 %v633, %v705
        %v707 = vpop.f32.mrb[0].mxu0
        %708 = vdwg.mxu0
        %v709 = vmax.f32 %v706, 0.0
        %v710 = vsub.f32 0.0, %v706
        %v711 = vmax.f32 %v710, 0.0
        %v712 = vld [vmem:[%s3] sm:$0xff]
        %v713 = vld [vmem:[%s4] sm:$0xff]
        %v715 = vcombine.high %v709, %v709
        %v717 = vunpack.c.l.s4 1966171168
        %v718 = vunpack.c.0.s8 %v717
        %v719 = vlaneseq
        %v720 = vshrl.u32 %v719, 7
        %v721 = vsub.s32 %v718, %v720
        %v722 = vrot.slane %v709, %v721
        %v724 = vunpack.c.l.s4 1966171168
        %v725 = vunpack.c.0.s8 %v724
        %v726 = vlaneseq
        %v727 = vshrl.u32 %v726, 7
        %v728 = vsub.s32 %v725, %v727
        %v729 = vrot.slane %v715, %v728
        %v730 = vcombine.high %v722, %v722
        %v731 = vcombine.high %v729, %v729
        %v733 = vunpack.c.l.s4 1966171168
        %v734 = vunpack.c.0.s8 %v733
        %v735 = vlaneseq
        %v736 = vshrl.u32 %v735, 7
        %v737 = vsub.s32 %v734, %v736
        %v738 = vrot.slane %v722, %v737
        %v740 = vunpack.c.l.s4 1966171168
        %v741 = vunpack.c.0.s8 %v740
        %v742 = vlaneseq
        %v743 = vshrl.u32 %v742, 7
        %v744 = vsub.s32 %v741, %v743
        %v745 = vrot.slane %v729, %v744
        %v747 = vunpack.c.l.s4 1966171168
        %v748 = vunpack.c.0.s8 %v747
        %v749 = vlaneseq
        %v750 = vshrl.u32 %v749, 7
        %v751 = vsub.s32 %v748, %v750
        %v752 = vrot.slane %v730, %v751
        %v754 = vunpack.c.l.s4 1966171168
        %v755 = vunpack.c.0.s8 %v754
        %v756 = vlaneseq
        %v757 = vshrl.u32 %v756, 7
        %v758 = vsub.s32 %v755, %v757
        %v759 = vrot.slane %v731, %v758
        %v760 = vcombine.high %v738, %v738
        %v761 = vcombine.high %v745, %v745
        %v762 = vcombine.high %v752, %v752
        %v763 = vcombine.high %v759, %v759
        %765 = vset.pattern.permute.xlu0 0
        %766 = vperm.xlu0 %765, %v712
        %v767 = vpop.permute.xlu0 %766
        %v769 = vlaneseq
        %v770 = vshrl.u32 %v769, 7
        %v771 = vsub.s32 0, %v770
        %v772 = vrot.slane %v738, %v771
        %v773 = vlaneseq
        %v774 = vshrl.u32 %v773, 7
        %v775 = vsub.s32 0, %v774
        %v776 = vrot.slane %v752, %v775
        %v777 = vlaneseq
        %v778 = vshrl.u32 %v777, 7
        %v779 = vsub.s32 0, %v778
        %v780 = vrot.slane %v760, %v779
        %v781 = vlaneseq
        %v782 = vshrl.u32 %v781, 7
        %v783 = vsub.s32 0, %v782
        %v784 = vrot.slane %v762, %v783
        %v785 = vlaneseq
        %v786 = vshrl.u32 %v785, 7
        %v787 = vsub.s32 0, %v786
        %v788 = vrot.slane %v745, %v787
        %v789 = vlaneseq
        %v790 = vshrl.u32 %v789, 7
        %v791 = vsub.s32 0, %v790
        %v792 = vrot.slane %v759, %v791
        %v793 = vlaneseq
        %v794 = vshrl.u32 %v793, 7
        %v795 = vsub.s32 0, %v794
        %v796 = vrot.slane %v761, %v795
        %v797 = vlaneseq
        %v798 = vshrl.u32 %v797, 7
        %v799 = vsub.s32 0, %v798
        %v800 = vrot.slane %v763, %v799
        %v809 = vmul.f32 %v767, %v772
        %v810 = vmul.f32 %v767, %v776
        %v811 = vmul.f32 %v767, %v780
        %v812 = vmul.f32 %v767, %v784
        %v813 = vmul.f32 %v767, %v788
        %v814 = vmul.f32 %v767, %v792
        %v815 = vmul.f32 %v767, %v796
        %v816 = vmul.f32 %v767, %v800
        %v818 = vcombine.high %v711, %v711
        %v820 = vunpack.c.l.s4 1966171168
        %v821 = vunpack.c.0.s8 %v820
        %v822 = vlaneseq
        %v823 = vshrl.u32 %v822, 7
        %v824 = vsub.s32 %v821, %v823
        %v825 = vrot.slane %v711, %v824
        %v827 = vunpack.c.l.s4 1966171168
        %v828 = vunpack.c.0.s8 %v827
        %v829 = vlaneseq
        %v830 = vshrl.u32 %v829, 7
        %v831 = vsub.s32 %v828, %v830
        %v832 = vrot.slane %v818, %v831
        %v833 = vcombine.high %v825, %v825
        %v834 = vcombine.high %v832, %v832
        %v836 = vunpack.c.l.s4 1966171168
        %v837 = vunpack.c.0.s8 %v836
        %v838 = vlaneseq
        %v839 = vshrl.u32 %v838, 7
        %v840 = vsub.s32 %v837, %v839
        %v841 = vrot.slane %v825, %v840
        %v843 = vunpack.c.l.s4 1966171168
        %v844 = vunpack.c.0.s8 %v843
        %v845 = vlaneseq
        %v846 = vshrl.u32 %v845, 7
        %v847 = vsub.s32 %v844, %v846
        %v848 = vrot.slane %v832, %v847
        %v850 = vunpack.c.l.s4 1966171168
        %v851 = vunpack.c.0.s8 %v850
        %v852 = vlaneseq
        %v853 = vshrl.u32 %v852, 7
        %v854 = vsub.s32 %v851, %v853
        %v855 = vrot.slane %v833, %v854
        %v857 = vunpack.c.l.s4 1966171168
        %v858 = vunpack.c.0.s8 %v857
        %v859 = vlaneseq
        %v860 = vshrl.u32 %v859, 7
        %v861 = vsub.s32 %v858, %v860
        %v862 = vrot.slane %v834, %v861
        %v863 = vcombine.high %v841, %v841
        %v864 = vcombine.high %v848, %v848
        %v865 = vcombine.high %v855, %v855
        %v866 = vcombine.high %v862, %v862
        %868 = vset.pattern.permute.xlu0 0
        %869 = vperm.xlu0 %868, %v713
        %v870 = vpop.permute.xlu0 %869
        %v872 = vlaneseq
        %v873 = vshrl.u32 %v872, 7
        %v874 = vsub.s32 0, %v873
        %v875 = vrot.slane %v841, %v874
        %v876 = vlaneseq
        %v877 = vshrl.u32 %v876, 7
        %v878 = vsub.s32 0, %v877
        %v879 = vrot.slane %v855, %v878
        %v880 = vlaneseq
        %v881 = vshrl.u32 %v880, 7
        %v882 = vsub.s32 0, %v881
        %v883 = vrot.slane %v863, %v882
        %v884 = vlaneseq
        %v885 = vshrl.u32 %v884, 7
        %v886 = vsub.s32 0, %v885
        %v887 = vrot.slane %v865, %v886
        %v888 = vlaneseq
        %v889 = vshrl.u32 %v888, 7
        %v890 = vsub.s32 0, %v889
        %v891 = vrot.slane %v848, %v890
        %v892 = vlaneseq
        %v893 = vshrl.u32 %v892, 7
        %v894 = vsub.s32 0, %v893
        %v895 = vrot.slane %v862, %v894
        %v896 = vlaneseq
        %v897 = vshrl.u32 %v896, 7
        %v898 = vsub.s32 0, %v897
        %v899 = vrot.slane %v864, %v898
        %v900 = vlaneseq
        %v901 = vshrl.u32 %v900, 7
        %v902 = vsub.s32 0, %v901
        %v903 = vrot.slane %v866, %v902
        %v912 = vmul.f32 %v870, %v875
        %v913 = vmul.f32 %v870, %v879
        %v914 = vmul.f32 %v870, %v883
        %v915 = vmul.f32 %v870, %v887
        %v916 = vmul.f32 %v870, %v891
        %v917 = vmul.f32 %v870, %v895
        %v918 = vmul.f32 %v870, %v899
        %v919 = vmul.f32 %v870, %v903
        %v920 = vadd.f32 %v809, %v912
        %v921 = vadd.f32 %v810, %v913
        %v922 = vadd.f32 %v811, %v914
        %v923 = vadd.f32 %v812, %v915
        %v924 = vadd.f32 %v813, %v916
        %v925 = vadd.f32 %v814, %v917
        %v926 = vadd.f32 %v815, %v918
        %v927 = vadd.f32 %v816, %v919
        %928 = vst [vmem:[%s230] sm:$0xff] %v920
        %929 = vst [vmem:[%s230 + $0x8] sm:$0xff] %v921
        %930 = vst [vmem:[%s230 + $0x10] sm:$0xff] %v922
        %931 = vst [vmem:[%s230 + $0x18] sm:$0xff] %v923
        %932 = vst [vmem:[%s230 + $0x20] sm:$0xff] %v924
        %933 = vst [vmem:[%s230 + $0x28] sm:$0xff] %v925
        %934 = vst [vmem:[%s230 + $0x30] sm:$0xff] %v926
        %935 = vst [vmem:[%s230 + $0x38] sm:$0xff] %v927
        %s936 = sand.u32 %s138, 1
        %s937 = scalar_lea.sflag [#allocation4], %s936
        %s938 = sand.u32 %s138, 1
        %s939 = smul.addr %s938, 64
        %s940 = scalar_lea.vmem [#allocation5], %s939
        // Predicated region
        $region45: #{tpu_custom_call.1} parent=39 // pred_check
          %p941 = pneg %p148
        $region46: #{tpu_custom_call.1} parent=39 // pred_check_branch
          %943 = sbr.rel (%p941) target = $region48
        $region47: #{tpu_custom_call.1} parent=39 // pred_region
          %s944 = smul.u32 8, %s20
          %s946 = ssub.s32 1024, 1024
          %947 = vsyncadd %s937, %s946
          %s948 = smul.addr %s944, 128
          %s949 = scalar_lea.hbm %s5, %s948
          %s950 = sshll.u32 %s940, 4
          %s951 = int_to_ptr.vmem [resolvable:$true] %s950
          %956 = dma.vmem_to_hbm [thread:$0]  %s951, 1024, %s949, %s937, 128, 128, 8
        $region48: #{tpu_custom_call.1} parent=39 // pred_fallthru
          _
      $region40: #{tpu_custom_call.1} parent=5 // pred_fallthru
        _
      %p957 = scmp.le.s32.totalorder 2, %s15
      // Predicated region
      $region49: #{tpu_custom_call.1} parent=5 // pred_check
        %p958 = pneg %p957
      $region50: #{tpu_custom_call.1} parent=5 // pred_check_branch
        %960 = sbr.rel (%p958) target = $region52
      $region51: #{tpu_custom_call.1} parent=5 // pred_region
        %s961 = ssub.s32 %s15, 2
        // Predicated region
        $region53: #{tpu_custom_call.1} parent=51 // pred_check
          %p962 = pneg %p154
        $region54: #{tpu_custom_call.1} parent=51 // pred_check_branch
          %964 = sbr.rel (%p962) target = $region56
        $region55: #{tpu_custom_call.1} parent=51 // pred_region
          %s965 = sand.u32 %s139, 1
          %s966 = scalar_lea.sflag [#allocation4], %s965
          %s967 = sand.u32 %s139, 1
          %s968 = smul.addr %s967, 64
          %s969 = scalar_lea.vmem [#allocation5], %s968
          %970 = dma.done %s966, 1024
        $region56: #{tpu_custom_call.1} parent=51 // pred_fallthru
          _
      $region52: #{tpu_custom_call.1} parent=5 // pred_fallthru
        _
    $region6: #{tpu_custom_call.1} parent=1 // loop_footer
      %s19 = sadd.s32 1, %s15
    $region7: #{tpu_custom_call.1} parent=1 // loop_footer_branch
      %14 = sbr.rel target = $region3
    $region8: #{tpu_custom_call.1} parent=1 // loop_exit
      _
    %971 = vsyncpa [#allocation3], 1
    %s972 = scalar_lea.sflag [#allocation3], 1
    %973 = vsyncpa %s972, 1
    %974 = vsyncpa [#allocation4], 1
    %s975 = scalar_lea.sflag [#allocation4], 1
    %976 = vsyncpa %s975, 1

</llo_original>
